<compile_context>
chip_gen: v7x
topology: tpu7x:2x2x1
jax: 0.10.0
libtpu: 0.0.40
codegen_flags: <defaults>
</compile_context>

<pallas_src>
import jax
import jax.numpy as jnp
from jax.experimental import pallas as pl
from jax.experimental.pallas import tpu as pltpu


LANE = 128  # TPU lane width; classifier output is padded to this for dense stores


def _round_up(a, m):
    return ((a + m - 1) // m) * m


def _choose_batch_tile(n, row_align):
    """Adaptive batch tile (rows per grid step).

    * tiny batch   : one tile of exactly the (sublane-aligned) batch size
    * medium batch : split into >=2 grid steps so v7x's two TensorCores both work
    * large batch  : 1024-row tiles (best measured HBM streaming efficiency)
    """
    n_al = _round_up(n, row_align)
    if n_al <= 2 * row_align:
        return n_al
    if n_al <= 2048:
        return _round_up((n_al + 1) // 2, row_align)
    return 1024


def _mlp_kernel(x_ref,
                w1_ref, s1_ref, t1_ref,
                w2_ref, s2_ref, t2_ref,
                w3_ref, b3_ref,
                out_ref):
    # ---- layer 1: pre-binarized linear + folded BN(+bias) + Hardtanh ----
    # bf16 x bf16 -> f32 accumulation: native single-pass MXU path, no upcast copies.
    h1 = jnp.dot(x_ref[...], w1_ref[...], preferred_element_type=jnp.float32)
    h1 = jnp.clip(h1 * s1_ref[...] + t1_ref[...], -1.0, 1.0)

    # ---- layer 2 ---- (post-Hardtanh values are mostly exactly +-1 -> bf16 cast is
    # near-lossless and keeps the matmul on the bf16 MXU path)
    h2 = jnp.dot(h1.astype(jnp.bfloat16), w2_ref[...],
                 preferred_element_type=jnp.float32)
    h2 = jnp.clip(h2 * s2_ref[...] + t2_ref[...], -1.0, 1.0)

    # ---- output layer: plain Linear (padded to 128 lanes, f32 bias add) ----
    logits = jnp.dot(h2.astype(jnp.bfloat16), w3_ref[...],
                     preferred_element_type=jnp.float32) + b3_ref[...]
    out_ref[...] = logits.astype(out_ref.dtype)


def neural_network_simplified_forward(x, kernel_params, *, tb=None,
                                      x_dtype=jnp.bfloat16):
    """x: (N, C, H, W) float32.  Returns logits (N, num_classes)."""
    n = x.shape[0]
    # Same row-major flatten as .view(N, -1); activation stream narrowed to bf16.
    x_flat = x.reshape(n, -1).astype(x_dtype)

    (w1b, s1, t1, w2b, s2, t2, w3p, b3p, num_classes) = kernel_params
    in_size, h1 = w1b.shape
    h2 = w2b.shape[1]
    out_pad = w3p.shape[1]

    # Sublane alignment: bf16 packs 16 rows per vreg sublane group, f32 packs 8.
    row_align = 16 if x_flat.dtype == jnp.bfloat16 else 8
    if tb is None:
        tb = _choose_batch_tile(n, row_align)
    else:
        tb = _round_up(tb, row_align)

    n_pad = _round_up(n, tb)
    if n_pad != n:
        x_flat = jnp.pad(x_flat, ((0, n_pad - n), (0, 0)))

    grid = (n_pad // tb,)

    flops = 2 * n_pad * (in_size * h1 + h1 * h2 + h2 * out_pad)
    param_bytes = sum(int(a.size) * a.dtype.itemsize
                      for a in (w1b, s1, t1, w2b, s2, t2, w3p, b3p))
    bytes_accessed = (param_bytes
                      + n_pad * in_size * x_flat.dtype.itemsize
                      + n_pad * out_pad * 4)

    out = pl.pallas_call(
        _mlp_kernel,
        out_shape=jax.ShapeDtypeStruct((n_pad, out_pad), jnp.float32),
        grid=grid,
        in_specs=[
            pl.BlockSpec((tb, in_size), lambda i: (i, 0)),   # x: tiled over batch
            pl.BlockSpec((in_size, h1), lambda i: (0, 0)),   # w1: VMEM-resident
            pl.BlockSpec((1, h1),       lambda i: (0, 0)),   # s1
            pl.BlockSpec((1, h1),       lambda i: (0, 0)),   # t1 (bias folded in)
            pl.BlockSpec((h1, h2),      lambda i: (0, 0)),   # w2
            pl.BlockSpec((1, h2),       lambda i: (0, 0)),   # s2
            pl.BlockSpec((1, h2),       lambda i: (0, 0)),   # t2
            pl.BlockSpec((h2, out_pad), lambda i: (0, 0)),   # w3 (lane-padded, bf16)
            pl.BlockSpec((1, out_pad),  lambda i: (0, 0)),   # b3 (lane-padded, f32)
        ],
        out_specs=pl.BlockSpec((tb, out_pad), lambda i: (i, 0)),
        compiler_params=pltpu.CompilerParams(
            dimension_semantics=("parallel",)),
        cost_estimate=pl.CostEstimate(flops=flops, transcendentals=0,
                                      bytes_accessed=bytes_accessed),
    )(x_flat, w1b, s1, t1, w2b, s2, t2, w3p, b3p)

    return out[:n, :num_classes]


def make_raw_params(key, input_size, h1, h2, h3, num_classes):
    """Deterministic synthetic raw parameters (same roles as the PyTorch module)."""
    ks = jax.random.split(key, 14)
    eps = 1e-5

    def bn(kg, kb, km, kv, feat):
        gamma = jax.random.normal(kg, (feat,), jnp.float32) * 0.1 + 1.0
        beta = jax.random.normal(kb, (feat,), jnp.float32) * 0.1
        mean = jax.random.normal(km, (feat,), jnp.float32) * 0.1
        var = jax.random.uniform(kv, (feat,), jnp.float32, minval=0.5, maxval=1.5)
        return gamma, beta, mean, var

    # Weights stored as (in_features, out_features) == transpose of the PyTorch layout.
    w1 = jax.random.normal(ks[0], (input_size, h1), jnp.float32) * 0.05
    b1 = jax.random.normal(ks[1], (h1,), jnp.float32) * 0.05
    g1, be1, m1, v1 = bn(ks[2], ks[3], ks[4], ks[5], h1)

    w2 = jax.random.normal(ks[6], (h1, h2), jnp.float32) * 0.05
    b2 = jax.random.normal(ks[7], (h2,), jnp.float32) * 0.05
    g2, be2, m2, v2 = bn(ks[8], ks[9], ks[10], ks[11], h2)

    w3 = jax.random.normal(ks[12], (h3, num_classes), jnp.float32) * 0.05
    b3 = jax.random.normal(ks[13], (num_classes,), jnp.float32) * 0.05

    return dict(w1=w1, b1=b1, g1=g1, be1=be1, m1=m1, v1=v1,
                w2=w2, b2=b2, g2=g2, be2=be2, m2=m2, v2=v2,
                w3=w3, b3=b3, eps=eps, num_classes=num_classes)


def prepare_kernel_params(raw, weight_dtype=jnp.bfloat16):
    """One-time param prep: binarize, fold BN+bias, narrow dtype, lane-pad classifier.

    On v7x, weight_dtype=jnp.float8_e4m3fn is also valid for the binarized weights
    (+-1/0 exact) and halves their HBM traffic again; bf16 is the portable default.
    """
    eps = raw["eps"]
    num_classes = raw["num_classes"]

    def fold(gamma, beta, mean, var, bias):
        s = gamma / jnp.sqrt(var + eps)
        t = beta - mean * s
        t = jnp.sign(bias) * s + t          # fold binarized bias into the BN shift
        return (s.reshape(1, -1).astype(jnp.float32),
                t.reshape(1, -1).astype(jnp.float32))

    # sign() matches torch.sign (0 -> 0); +-1 and 0 are exact in bf16.
    w1b = jnp.sign(raw["w1"]).astype(weight_dtype)
    w2b = jnp.sign(raw["w2"]).astype(weight_dtype)
    s1, t1 = fold(raw["g1"], raw["be1"], raw["m1"], raw["v1"], raw["b1"])
    s2, t2 = fold(raw["g2"], raw["be2"], raw["m2"], raw["v2"], raw["b2"])

    h3, nc = raw["w3"].shape
    out_pad = _round_up(nc, LANE)
    w3p = (jnp.zeros((h3, out_pad), jnp.bfloat16)
           .at[:, :nc].set(raw["w3"].astype(jnp.bfloat16)))
    b3p = jnp.zeros((1, out_pad), jnp.float32).at[:, :nc].set(raw["b3"])

    return (w1b, s1, t1, w2b, s2, t2, w3p, b3p, num_classes)


def reference_forward(x, raw):
    """Pure-JAX f32 reference implementing the PyTorch forward (eval-mode BN)."""
    eps = raw["eps"]
    h = x.reshape(x.shape[0], -1)
    h = h @ jnp.sign(raw["w1"]) + jnp.sign(raw["b1"])
    h = (h - raw["m1"]) / jnp.sqrt(raw["v1"] + eps) * raw["g1"] + raw["be1"]
    h = jnp.clip(h, -1.0, 1.0)
    h = h @ jnp.sign(raw["w2"]) + jnp.sign(raw["b2"])
    h = (h - raw["m2"]) / jnp.sqrt(raw["v2"] + eps) * raw["g2"] + raw["be2"]
    h = jnp.clip(h, -1.0, 1.0)
    return h @ raw["w3"] + raw["b3"]


def reference_forward_matched(x, kernel_params):
    """Pure-JAX reference using the SAME mixed precision as the kernel (bf16 MXU
    operands, f32 accumulation) — validates the kernel implementation exactly."""
    (w1b, s1, t1, w2b, s2, t2, w3p, b3p, num_classes) = kernel_params
    h = x.reshape(x.shape[0], -1).astype(w1b.dtype)
    h = jnp.dot(h, w1b, preferred_element_type=jnp.float32)
    h = jnp.clip(h * s1 + t1, -1.0, 1.0).astype(w2b.dtype)
    h = jnp.dot(h, w2b, preferred_element_type=jnp.float32)
    h = jnp.clip(h * s2 + t2, -1.0, 1.0).astype(w3p.dtype)
    h = jnp.dot(h, w3p, preferred_element_type=jnp.float32) + b3p
    return h[:, :num_classes]


if __name__ == "__main__":
    # Shapes consistent with the module: x is NCHW with input_size = C*H*W = 1024.
    batch, C, H, W = 2, 4, 16, 16
    input_size = C * H * W
    hidden_size1, hidden_size2, hidden_size3 = 256, 128, 128
    num_classes = 8  # len(commands)

    key = jax.random.PRNGKey(0)
    kx, ky, kp = jax.random.split(key, 3)
    # Deterministic test inputs, rounded to bf16-representable values so the kernel's
    # bf16 activation stream is a lossless cast of the f32 input and the comparison
    # against the exact f32 reference isolates the mixed-precision matmul path.
    x = jax.random.normal(kx, (batch, C, H, W), jnp.float32)
    x = x.astype(jnp.bfloat16).astype(jnp.float32)
    y = jax.random.randint(ky, (batch,), 0, num_classes)  # unused by forward, kept for parity

    raw = make_raw_params(kp, input_size, hidden_size1, hidden_size2,
                          hidden_size3, num_classes)
    kernel_params = prepare_kernel_params(raw)

    out = neural_network_simplified_forward(x, kernel_params)
    out = jax.block_until_ready(out)

    ref_matched = reference_forward_matched(x, kernel_params)   # same precision as kernel
    ref_f32 = reference_forward(x, raw)                         # exact PyTorch semantics

    assert out.shape == (batch, num_classes)
    assert jnp.allclose(out, ref_matched, atol=1e-3, rtol=1e-3), \
        "mismatch vs matched-precision JAX reference"
    assert jnp.allclose(out, ref_f32, atol=1e-2, rtol=1e-2), \
        "mismatch vs f32 JAX reference"

    print("KERNEL_OK")
</pallas_src>

<mosaic_0001>
module attributes {stable_mosaic.version = 11 : i64} {
  func.func @_mlp_kernel(%arg0: i32, %arg1: memref<16x1024xbf16, #tpu.memory_space<vmem>>, %arg2: memref<1024x256xbf16, #tpu.memory_space<vmem>>, %arg3: memref<1x256xf32, #tpu.memory_space<vmem>>, %arg4: memref<1x256xf32, #tpu.memory_space<vmem>>, %arg5: memref<256x128xbf16, #tpu.memory_space<vmem>>, %arg6: memref<1x128xf32, #tpu.memory_space<vmem>>, %arg7: memref<1x128xf32, #tpu.memory_space<vmem>>, %arg8: memref<128x128xbf16, #tpu.memory_space<vmem>>, %arg9: memref<1x128xf32, #tpu.memory_space<vmem>>, %arg10: memref<16x128xf32, #tpu.memory_space<vmem>>) attributes {dimension_semantics = [#tpu.dimension_semantics<parallel>], iteration_bounds = array<i64: 1>, scalar_prefetch = 0 : i64, scratch_operands = 0 : i64, tpu.core_type = #tpu.core_type<tc>, window_params = [{transform_indices = @transform_0, window_bounds = array<i64: 16, 1024>}, {pipeline_mode = #tpu.pipeline_mode<synchronous>, transform_indices = @transform_1, window_bounds = array<i64: 1024, 256>}, {pipeline_mode = #tpu.pipeline_mode<synchronous>, transform_indices = @transform_2, window_bounds = array<i64: 1, 256>}, {pipeline_mode = #tpu.pipeline_mode<synchronous>, transform_indices = @transform_3, window_bounds = array<i64: 1, 256>}, {pipeline_mode = #tpu.pipeline_mode<synchronous>, transform_indices = @transform_4, window_bounds = array<i64: 256, 128>}, {pipeline_mode = #tpu.pipeline_mode<synchronous>, transform_indices = @transform_5, window_bounds = array<i64: 1, 128>}, {pipeline_mode = #tpu.pipeline_mode<synchronous>, transform_indices = @transform_6, window_bounds = array<i64: 1, 128>}, {pipeline_mode = #tpu.pipeline_mode<synchronous>, transform_indices = @transform_7, window_bounds = array<i64: 128, 128>}, {pipeline_mode = #tpu.pipeline_mode<synchronous>, transform_indices = @transform_8, window_bounds = array<i64: 1, 128>}, {transform_indices = @transform_9, window_bounds = array<i64: 16, 128>}]} {
    %c0 = arith.constant 0 : index
    %c0_0 = arith.constant 0 : index
    %0 = vector.load %arg1[%c0, %c0_0] : memref<16x1024xbf16, #tpu.memory_space<vmem>>, vector<16x1024xbf16>
    %c0_1 = arith.constant 0 : index
    %c0_2 = arith.constant 0 : index
    %1 = vector.load %arg2[%c0_1, %c0_2] : memref<1024x256xbf16, #tpu.memory_space<vmem>>, vector<1024x256xbf16>
    %cst = arith.constant dense<0.000000e+00> : vector<16x256xf32>
    %2 = tpu.matmul %0, %1, %cst {dimension_numbers = #tpu.dot_dimension_numbers<[1], [0], [0], [1], [0, 0, 1, 1], [], []>} : vector<16x1024xbf16>, vector<1024x256xbf16>, vector<16x256xf32> -> vector<16x256xf32>
    %c0_3 = arith.constant 0 : index
    %c0_4 = arith.constant 0 : index
    %3 = vector.load %arg3[%c0_3, %c0_4] : memref<1x256xf32, #tpu.memory_space<vmem>>, vector<1x256xf32>
    %4 = vector.broadcast %3 : vector<1x256xf32> to vector<16x256xf32>
    %5 = arith.mulf %2, %4 : vector<16x256xf32>
    %c0_5 = arith.constant 0 : index
    %c0_6 = arith.constant 0 : index
    %6 = vector.load %arg4[%c0_5, %c0_6] : memref<1x256xf32, #tpu.memory_space<vmem>>, vector<1x256xf32>
    %7 = vector.broadcast %6 : vector<1x256xf32> to vector<16x256xf32>
    %8 = arith.addf %5, %7 : vector<16x256xf32>
    %cst_7 = arith.constant -1.000000e+00 : f32
    %cst_8 = arith.constant 1.000000e+00 : f32
    %9 = vector.broadcast %cst_7 : f32 to vector<16x256xf32>
    %10 = arith.maximumf %9, %8 : vector<16x256xf32>
    %11 = vector.broadcast %cst_8 : f32 to vector<16x256xf32>
    %12 = arith.minimumf %11, %10 : vector<16x256xf32>
    %13 = arith.truncf %12 : vector<16x256xf32> to vector<16x256xbf16>
    %c0_9 = arith.constant 0 : index
    %c0_10 = arith.constant 0 : index
    %14 = vector.load %arg5[%c0_9, %c0_10] : memref<256x128xbf16, #tpu.memory_space<vmem>>, vector<256x128xbf16>
    %cst_11 = arith.constant dense<0.000000e+00> : vector<16x128xf32>
    %15 = tpu.matmul %13, %14, %cst_11 {dimension_numbers = #tpu.dot_dimension_numbers<[1], [0], [0], [1], [0, 0, 1, 1], [], []>} : vector<16x256xbf16>, vector<256x128xbf16>, vector<16x128xf32> -> vector<16x128xf32>
    %c0_12 = arith.constant 0 : index
    %c0_13 = arith.constant 0 : index
    %16 = vector.load %arg6[%c0_12, %c0_13] : memref<1x128xf32, #tpu.memory_space<vmem>>, vector<1x128xf32>
    %17 = vector.broadcast %16 : vector<1x128xf32> to vector<16x128xf32>
    %18 = arith.mulf %15, %17 : vector<16x128xf32>
    %c0_14 = arith.constant 0 : index
    %c0_15 = arith.constant 0 : index
    %19 = vector.load %arg7[%c0_14, %c0_15] : memref<1x128xf32, #tpu.memory_space<vmem>>, vector<1x128xf32>
    %20 = vector.broadcast %19 : vector<1x128xf32> to vector<16x128xf32>
    %21 = arith.addf %18, %20 : vector<16x128xf32>
    %cst_16 = arith.constant -1.000000e+00 : f32
    %cst_17 = arith.constant 1.000000e+00 : f32
    %22 = vector.broadcast %cst_16 : f32 to vector<16x128xf32>
    %23 = arith.maximumf %22, %21 : vector<16x128xf32>
    %24 = vector.broadcast %cst_17 : f32 to vector<16x128xf32>
    %25 = arith.minimumf %24, %23 : vector<16x128xf32>
    %26 = arith.truncf %25 : vector<16x128xf32> to vector<16x128xbf16>
    %c0_18 = arith.constant 0 : index
    %c0_19 = arith.constant 0 : index
    %27 = vector.load %arg8[%c0_18, %c0_19] : memref<128x128xbf16, #tpu.memory_space<vmem>>, vector<128x128xbf16>
    %cst_20 = arith.constant dense<0.000000e+00> : vector<16x128xf32>
    %28 = tpu.matmul %26, %27, %cst_20 {dimension_numbers = #tpu.dot_dimension_numbers<[1], [0], [0], [1], [0, 0, 1, 1], [], []>} : vector<16x128xbf16>, vector<128x128xbf16>, vector<16x128xf32> -> vector<16x128xf32>
    %c0_21 = arith.constant 0 : index
    %c0_22 = arith.constant 0 : index
    %29 = vector.load %arg9[%c0_21, %c0_22] : memref<1x128xf32, #tpu.memory_space<vmem>>, vector<1x128xf32>
    %30 = vector.broadcast %29 : vector<1x128xf32> to vector<16x128xf32>
    %31 = arith.addf %28, %30 : vector<16x128xf32>
    %c0_23 = arith.constant 0 : index
    %c0_24 = arith.constant 0 : index
    %32 = vector.load %arg10[%c0_23, %c0_24] : memref<16x128xf32, #tpu.memory_space<vmem>>, vector<16x128xf32>
    tpu.vector_store %arg10[%c0_23, %c0_24], %31 {strides = array<i32>} : memref<16x128xf32, #tpu.memory_space<vmem>>, vector<16x128xf32>,
    return
  }
  func.func @transform_0(%arg0: i32) -> (i32, i32) {
    %c0_i32 = arith.constant 0 : i32
    %c0_i32_0 = arith.constant 0 : i32
    return %arg0, %c0_i32 : i32, i32
  }
  func.func @transform_1(%arg0: i32) -> (i32, i32) {
    %c0_i32 = arith.constant 0 : i32
    %c0_i32_0 = arith.constant 0 : i32
    %c0_i32_1 = arith.constant 0 : i32
    return %c0_i32, %c0_i32_0 : i32, i32
  }
  func.func @transform_2(%arg0: i32) -> (i32, i32) {
    %c0_i32 = arith.constant 0 : i32
    %c0_i32_0 = arith.constant 0 : i32
    %c0_i32_1 = arith.constant 0 : i32
    return %c0_i32, %c0_i32_0 : i32, i32
  }
  func.func @transform_3(%arg0: i32) -> (i32, i32) {
    %c0_i32 = arith.constant 0 : i32
    %c0_i32_0 = arith.constant 0 : i32
    %c0_i32_1 = arith.constant 0 : i32
    return %c0_i32, %c0_i32_0 : i32, i32
  }
  func.func @transform_4(%arg0: i32) -> (i32, i32) {
    %c0_i32 = arith.constant 0 : i32
    %c0_i32_0 = arith.constant 0 : i32
    %c0_i32_1 = arith.constant 0 : i32
    return %c0_i32, %c0_i32_0 : i32, i32
  }
  func.func @transform_5(%arg0: i32) -> (i32, i32) {
    %c0_i32 = arith.constant 0 : i32
    %c0_i32_0 = arith.constant 0 : i32
    %c0_i32_1 = arith.constant 0 : i32
    return %c0_i32, %c0_i32_0 : i32, i32
  }
  func.func @transform_6(%arg0: i32) -> (i32, i32) {
    %c0_i32 = arith.constant 0 : i32
    %c0_i32_0 = arith.constant 0 : i32
    %c0_i32_1 = arith.constant 0 : i32
    return %c0_i32, %c0_i32_0 : i32, i32
  }
  func.func @transform_7(%arg0: i32) -> (i32, i32) {
    %c0_i32 = arith.constant 0 : i32
    %c0_i32_0 = arith.constant 0 : i32
    %c0_i32_1 = arith.constant 0 : i32
    return %c0_i32, %c0_i32_0 : i32, i32
  }
  func.func @transform_8(%arg0: i32) -> (i32, i32) {
    %c0_i32 = arith.constant 0 : i32
    %c0_i32_0 = arith.constant 0 : i32
    %c0_i32_1 = arith.constant 0 : i32
    return %c0_i32, %c0_i32_0 : i32, i32
  }
  func.func @transform_9(%arg0: i32) -> (i32, i32) {
    %c0_i32 = arith.constant 0 : i32
    %c0_i32_0 = arith.constant 0 : i32
    return %arg0, %c0_i32 : i32, i32
  }
}

</mosaic_0001>

<llo_original>
// kernel: tpu_custom_call.1
$region0: #{tpu_custom_call.1}
  #allocation0 [shape = 'u32[]', space=smem, size = 0x4, offset = 0x4, fixed_abs, tag = 'smem constant byte address 0x4 - core index']
  #allocation1 [shape = 'u32[144,128]{1,0:T(1,128)}', space=vmem, size = 0x12000, scoped, tag = 'internal scratch']
  %s0 = inlined_call_operand.hbm [shape: bf16[16,1024], index: 0, kind: input, shape index: {}]
  %s1 = inlined_call_operand.hbm [shape: bf16[1024,256], index: 1, kind: input, shape index: {}]
  %s2 = inlined_call_operand.vmem [shape: f32[1,256], index: 2, kind: input, shape index: {}]
  %s3 = inlined_call_operand.vmem [shape: f32[1,256], index: 3, kind: input, shape index: {}]
  %s4 = inlined_call_operand.hbm [shape: bf16[256,128], index: 4, kind: input, shape index: {}]
  %s5 = inlined_call_operand.vmem [shape: f32[1,128], index: 5, kind: input, shape index: {}]
  %s6 = inlined_call_operand.vmem [shape: f32[1,128], index: 6, kind: input, shape index: {}]
  %s7 = inlined_call_operand.hbm [shape: bf16[128,128], index: 7, kind: input, shape index: {}]
  %s8 = inlined_call_operand.vmem [shape: f32[1,128], index: 8, kind: input, shape index: {}]
  %s9 = inlined_call_operand.hbm [shape: f32[16,128], index: 9, kind: output, shape index: {}]
  %s10 = sld [smem:[#allocation0]]
  $region62: #{tpu_custom_call.1} parent=0
    _
  %s12 = ssub.s32 1, %s10
  %s13 = scalar_select 0, %s12, %s10
  $region1: #{tpu_custom_call.1} parent=0
    #allocation2 [shape = 'u8[32768]{0}', space=vmem, size = 0x8000, scoped, tag = 'input window, operand 0, single buffered']
    #allocation3 [shape = 's32[1]{0}', space=sflag, size = 0x4, scoped, tag = 'scoped memory for tpu_custom_call.1']
    #allocation4 [shape = 's32[1]{0}', space=sflag, size = 0x4, scoped, tag = 'scoped memory for tpu_custom_call.1']
    #allocation5 [shape = 'u8[524288]{0}', space=vmem, size = 0x80000, scoped, tag = 'input window, operand 1, single buffered']
    #allocation6 [shape = 's32[1]{0}', space=sflag, size = 0x4, scoped, tag = 'scoped memory for tpu_custom_call.1']
    #allocation7 [shape = 'u8[65536]{0}', space=vmem, size = 0x10000, scoped, tag = 'input window, operand 4, single buffered']
    #allocation8 [shape = 'u8[32768]{0}', space=vmem, size = 0x8000, scoped, tag = 'input window, operand 7, single buffered']
    #allocation9 [shape = 's32[1]{0}', space=sflag, size = 0x4, scoped, tag = 'scoped memory for tpu_custom_call.1']
    #allocation10 [shape = 'u8[8192]{0}', space=vmem, size = 0x2000, scoped, tag = 'output window, operand 0, single buffered']
    %14 = vsyncpa [#allocation3], 0
    %15 = vsyncpa [#allocation6], 0
    %16 = vsyncpa [#allocation9], 0
    %17 = vsyncpa [#allocation4], 0
    // Predicated region
    $region2: #{tpu_custom_call.1} parent=1 // pred_check
      _
    $region3: #{tpu_custom_call.1} parent=1 // pred_check_branch
      %19 = sbr.rel (0) target = $region5
    $region4: #{tpu_custom_call.1} parent=1 // pred_region
      %s21 = ssub.s32 1024, 1024
      %22 = vsyncadd [#allocation3], %s21
      %s23 = sshll.u32 [#allocation2], 4
      %s24 = int_to_ptr.vmem [resolvable:$true] %s23
      %29 = dma.hbm_to_vmem [thread:$0]  %s0, 1024, %s24, [#allocation3], 512, 512, 32
    $region5: #{tpu_custom_call.1} parent=1 // pred_fallthru
      _
    // Predicated region
    $region6: #{tpu_custom_call.1} parent=1 // pred_check
      _
    $region7: #{tpu_custom_call.1} parent=1 // pred_check_branch
      %31 = sbr.rel (0) target = $region9
    $region8: #{tpu_custom_call.1} parent=1 // pred_region
      %s33 = ssub.s32 16384, 16384
      %34 = vsyncadd [#allocation6], %s33
      %s35 = sshll.u32 [#allocation5], 4
      %s36 = int_to_ptr.vmem [resolvable:$true] %s35
      %41 = dma.hbm_to_vmem [thread:$0]  %s1, 16384, %s36, [#allocation6], 128, 128, 8
    $region9: #{tpu_custom_call.1} parent=1 // pred_fallthru
      _
    // Predicated region
    $region10: #{tpu_custom_call.1} parent=1 // pred_check
      _
    $region11: #{tpu_custom_call.1} parent=1 // pred_check_branch
      %43 = sbr.rel (0) target = $region13
    $region12: #{tpu_custom_call.1} parent=1 // pred_region
      _
    $region13: #{tpu_custom_call.1} parent=1 // pred_fallthru
      _
    // Predicated region
    $region14: #{tpu_custom_call.1} parent=1 // pred_check
      _
    $region15: #{tpu_custom_call.1} parent=1 // pred_check_branch
      %45 = sbr.rel (0) target = $region17
    $region16: #{tpu_custom_call.1} parent=1 // pred_region
      _
    $region17: #{tpu_custom_call.1} parent=1 // pred_fallthru
      _
    // Predicated region
    $region18: #{tpu_custom_call.1} parent=1 // pred_check
      _
    $region19: #{tpu_custom_call.1} parent=1 // pred_check_branch
      %47 = sbr.rel (0) target = $region21
    $region20: #{tpu_custom_call.1} parent=1 // pred_region
      %s49 = ssub.s32 2048, 2048
      %50 = vsyncadd [#allocation6], %s49
      %s51 = sshll.u32 [#allocation7], 4
      %s52 = int_to_ptr.vmem [resolvable:$true] %s51
      %57 = dma.hbm_to_vmem [thread:$0]  %s4, 2048, %s52, [#allocation6], 64, 64, 4
    $region21: #{tpu_custom_call.1} parent=1 // pred_fallthru
      _
    // Predicated region
    $region22: #{tpu_custom_call.1} parent=1 // pred_check
      _
    $region23: #{tpu_custom_call.1} parent=1 // pred_check_branch
      %59 = sbr.rel (0) target = $region25
    $region24: #{tpu_custom_call.1} parent=1 // pred_region
      _
    $region25: #{tpu_custom_call.1} parent=1 // pred_fallthru
      _
    // Predicated region
    $region26: #{tpu_custom_call.1} parent=1 // pred_check
      _
    $region27: #{tpu_custom_call.1} parent=1 // pred_check_branch
      %61 = sbr.rel (0) target = $region29
    $region28: #{tpu_custom_call.1} parent=1 // pred_region
      _
    $region29: #{tpu_custom_call.1} parent=1 // pred_fallthru
      _
    // Predicated region
    $region30: #{tpu_custom_call.1} parent=1 // pred_check
      _
    $region31: #{tpu_custom_call.1} parent=1 // pred_check_branch
      %63 = sbr.rel (0) target = $region33
    $region32: #{tpu_custom_call.1} parent=1 // pred_region
      %s65 = ssub.s32 1024, 1024
      %66 = vsyncadd [#allocation9], %s65
      %s67 = sshll.u32 [#allocation8], 4
      %s68 = int_to_ptr.vmem [resolvable:$true] %s67
      %73 = dma.hbm_to_vmem [thread:$0]  %s7, 1024, %s68, [#allocation9], 64, 64, 4
    $region33: #{tpu_custom_call.1} parent=1 // pred_fallthru
      _
    // Predicated region
    $region34: #{tpu_custom_call.1} parent=1 // pred_check
      _
    $region35: #{tpu_custom_call.1} parent=1 // pred_check_branch
      %75 = sbr.rel (0) target = $region37
    $region36: #{tpu_custom_call.1} parent=1 // pred_region
      _
    $region37: #{tpu_custom_call.1} parent=1 // pred_fallthru
      _
    // Predicated region
    $region38: #{tpu_custom_call.1} parent=1 // pred_check
      _
    $region39: #{tpu_custom_call.1} parent=1 // pred_check_branch
      %77 = sbr.rel (0) target = $region41
    $region40: #{tpu_custom_call.1} parent=1 // pred_region
      %78 = dma.done [#allocation3], 1024
    $region41: #{tpu_custom_call.1} parent=1 // pred_fallthru
      _
    // Predicated region
    $region42: #{tpu_custom_call.1} parent=1 // pred_check
      _
    $region43: #{tpu_custom_call.1} parent=1 // pred_check_branch
      %80 = sbr.rel (0) target = $region45
    $region44: #{tpu_custom_call.1} parent=1 // pred_region
      %81 = dma.done [#allocation6], 16384
    $region45: #{tpu_custom_call.1} parent=1 // pred_fallthru
      _
    // Predicated region
    $region46: #{tpu_custom_call.1} parent=1 // pred_check
      _
    $region47: #{tpu_custom_call.1} parent=1 // pred_check_branch
      %83 = sbr.rel (0) target = $region49
    $region48: #{tpu_custom_call.1} parent=1 // pred_region
      %84 = dma.done [#allocation6], 2048
    $region49: #{tpu_custom_call.1} parent=1 // pred_fallthru
      _
    // Predicated region
    $region50: #{tpu_custom_call.1} parent=1 // pred_check
      _
    $region51: #{tpu_custom_call.1} parent=1 // pred_check_branch
      %86 = sbr.rel (0) target = $region53
    $region52: #{tpu_custom_call.1} parent=1 // pred_region
      %87 = dma.done [#allocation9], 1024
    $region53: #{tpu_custom_call.1} parent=1 // pred_fallthru
      _
    %v89 = vld [vmem:[#allocation2] sm:$0xff]
    %v90 = vld [vmem:[#allocation2 + $0x8] sm:$0xff]
    %v91 = vld [vmem:[#allocation2 + $0x10] sm:$0xff]
    %v92 = vld [vmem:[#allocation2 + $0x18] sm:$0xff]
    %v93 = vld [vmem:[#allocation2 + $0x20] sm:$0xff]
    %v94 = vld [vmem:[#allocation2 + $0x28] sm:$0xff]
    %v95 = vld [vmem:[#allocation2 + $0x30] sm:$0xff]
    %v96 = vld [vmem:[#allocation2 + $0x38] sm:$0xff]
    %v97 = vld [vmem:[#allocation5] sm:$0xff]
    %v98 = vld [vmem:[#allocation5 + $0x8] sm:$0xff]
    %v99 = vld [vmem:[#allocation5 + $0x10] sm:$0xff]
    %v100 = vld [vmem:[#allocation5 + $0x18] sm:$0xff]
    %v101 = vld [vmem:[#allocation5 + $0x20] sm:$0xff]
    %v102 = vld [vmem:[#allocation5 + $0x28] sm:$0xff]
    %v103 = vld [vmem:[#allocation5 + $0x30] sm:$0xff]
    %v104 = vld [vmem:[#allocation5 + $0x38] sm:$0xff]
    %v105 = vld [vmem:[#allocation5 + $0x40] sm:$0xff]
    %v106 = vld [vmem:[#allocation5 + $0x48] sm:$0xff]
    %v107 = vld [vmem:[#allocation5 + $0x50] sm:$0xff]
    %v108 = vld [vmem:[#allocation5 + $0x58] sm:$0xff]
    %v109 = vld [vmem:[#allocation5 + $0x60] sm:$0xff]
    %v110 = vld [vmem:[#allocation5 + $0x68] sm:$0xff]
    %v111 = vld [vmem:[#allocation5 + $0x70] sm:$0xff]
    %v112 = vld [vmem:[#allocation5 + $0x78] sm:$0xff]
    %v113 = vld [vmem:[#allocation5 + $0x80] sm:$0xff]
    %v114 = vld [vmem:[#allocation5 + $0x88] sm:$0xff]
    %v115 = vld [vmem:[#allocation5 + $0x90] sm:$0xff]
    %v116 = vld [vmem:[#allocation5 + $0x98] sm:$0xff]
    %v117 = vld [vmem:[#allocation5 + $0xa0] sm:$0xff]
    %v118 = vld [vmem:[#allocation5 + $0xa8] sm:$0xff]
    %v119 = vld [vmem:[#allocation5 + $0xb0] sm:$0xff]
    %v120 = vld [vmem:[#allocation5 + $0xb8] sm:$0xff]
    %v121 = vld [vmem:[#allocation5 + $0xc0] sm:$0xff]
    %v122 = vld [vmem:[#allocation5 + $0xc8] sm:$0xff]
    %v123 = vld [vmem:[#allocation5 + $0xd0] sm:$0xff]
    %v124 = vld [vmem:[#allocation5 + $0xd8] sm:$0xff]
    %v125 = vld [vmem:[#allocation5 + $0xe0] sm:$0xff]
    %v126 = vld [vmem:[#allocation5 + $0xe8] sm:$0xff]
    %v127 = vld [vmem:[#allocation5 + $0xf0] sm:$0xff]
    %v128 = vld [vmem:[#allocation5 + $0xf8] sm:$0xff]
    %v129 = vld [vmem:[#allocation5 + $0x100] sm:$0xff]
    %v130 = vld [vmem:[#allocation5 + $0x108] sm:$0xff]
    %v131 = vld [vmem:[#allocation5 + $0x110] sm:$0xff]
    %v132 = vld [vmem:[#allocation5 + $0x118] sm:$0xff]
    %v133 = vld [vmem:[#allocation5 + $0x120] sm:$0xff]
    %v134 = vld [vmem:[#allocation5 + $0x128] sm:$0xff]
    %v135 = vld [vmem:[#allocation5 + $0x130] sm:$0xff]
    %v136 = vld [vmem:[#allocation5 + $0x138] sm:$0xff]
    %v137 = vld [vmem:[#allocation5 + $0x140] sm:$0xff]
    %v138 = vld [vmem:[#allocation5 + $0x148] sm:$0xff]
    %v139 = vld [vmem:[#allocation5 + $0x150] sm:$0xff]
    %v140 = vld [vmem:[#allocation5 + $0x158] sm:$0xff]
    %v141 = vld [vmem:[#allocation5 + $0x160] sm:$0xff]
    %v142 = vld [vmem:[#allocation5 + $0x168] sm:$0xff]
    %v143 = vld [vmem:[#allocation5 + $0x170] sm:$0xff]
    %v144 = vld [vmem:[#allocation5 + $0x178] sm:$0xff]
    %v145 = vld [vmem:[#allocation5 + $0x180] sm:$0xff]
    %v146 = vld [vmem:[#allocation5 + $0x188] sm:$0xff]
    %v147 = vld [vmem:[#allocation5 + $0x190] sm:$0xff]
    %v148 = vld [vmem:[#allocation5 + $0x198] sm:$0xff]
    %v149 = vld [vmem:[#allocation5 + $0x1a0] sm:$0xff]
    %v150 = vld [vmem:[#allocation5 + $0x1a8] sm:$0xff]
    %v151 = vld [vmem:[#allocation5 + $0x1b0] sm:$0xff]
    %v152 = vld [vmem:[#allocation5 + $0x1b8] sm:$0xff]
    %v153 = vld [vmem:[#allocation5 + $0x1c0] sm:$0xff]
    %v154 = vld [vmem:[#allocation5 + $0x1c8] sm:$0xff]
    %v155 = vld [vmem:[#allocation5 + $0x1d0] sm:$0xff]
    %v156 = vld [vmem:[#allocation5 + $0x1d8] sm:$0xff]
    %v157 = vld [vmem:[#allocation5 + $0x1e0] sm:$0xff]
    %v158 = vld [vmem:[#allocation5 + $0x1e8] sm:$0xff]
    %v159 = vld [vmem:[#allocation5 + $0x1f0] sm:$0xff]
    %v160 = vld [vmem:[#allocation5 + $0x1f8] sm:$0xff]
    %v161 = vld [vmem:[#allocation5 + $0x200] sm:$0xff]
    %v162 = vld [vmem:[#allocation5 + $0x208] sm:$0xff]
    %v163 = vld [vmem:[#allocation5 + $0x210] sm:$0xff]
    %v164 = vld [vmem:[#allocation5 + $0x218] sm:$0xff]
    %v165 = vld [vmem:[#allocation5 + $0x220] sm:$0xff]
    %v166 = vld [vmem:[#allocation5 + $0x228] sm:$0xff]
    %v167 = vld [vmem:[#allocation5 + $0x230] sm:$0xff]
    %v168 = vld [vmem:[#allocation5 + $0x238] sm:$0xff]
    %v169 = vld [vmem:[#allocation5 + $0x240] sm:$0xff]
    %v170 = vld [vmem:[#allocation5 + $0x248] sm:$0xff]
    %v171 = vld [vmem:[#allocation5 + $0x250] sm:$0xff]
    %v172 = vld [vmem:[#allocation5 + $0x258] sm:$0xff]
    %v173 = vld [vmem:[#allocation5 + $0x260] sm:$0xff]
    %v174 = vld [vmem:[#allocation5 + $0x268] sm:$0xff]
    %v175 = vld [vmem:[#allocation5 + $0x270] sm:$0xff]
    %v176 = vld [vmem:[#allocation5 + $0x278] sm:$0xff]
    %v177 = vld [vmem:[#allocation5 + $0x280] sm:$0xff]
    %v178 = vld [vmem:[#allocation5 + $0x288] sm:$0xff]
    %v179 = vld [vmem:[#allocation5 + $0x290] sm:$0xff]
    %v180 = vld [vmem:[#allocation5 + $0x298] sm:$0xff]
    %v181 = vld [vmem:[#allocation5 + $0x2a0] sm:$0xff]
    %v182 = vld [vmem:[#allocation5 + $0x2a8] sm:$0xff]
    %v183 = vld [vmem:[#allocation5 + $0x2b0] sm:$0xff]
    %v184 = vld [vmem:[#allocation5 + $0x2b8] sm:$0xff]
    %v185 = vld [vmem:[#allocation5 + $0x2c0] sm:$0xff]
    %v186 = vld [vmem:[#allocation5 + $0x2c8] sm:$0xff]
    %v187 = vld [vmem:[#allocation5 + $0x2d0] sm:$0xff]
    %v188 = vld [vmem:[#allocation5 + $0x2d8] sm:$0xff]
    %v189 = vld [vmem:[#allocation5 + $0x2e0] sm:$0xff]
    %v190 = vld [vmem:[#allocation5 + $0x2e8] sm:$0xff]
    %v191 = vld [vmem:[#allocation5 + $0x2f0] sm:$0xff]
    %v192 = vld [vmem:[#allocation5 + $0x2f8] sm:$0xff]
    %v193 = vld [vmem:[#allocation5 + $0x300] sm:$0xff]
    %v194 = vld [vmem:[#allocation5 + $0x308] sm:$0xff]
    %v195 = vld [vmem:[#allocation5 + $0x310] sm:$0xff]
    %v196 = vld [vmem:[#allocation5 + $0x318] sm:$0xff]
    %v197 = vld [vmem:[#allocation5 + $0x320] sm:$0xff]
    %v198 = vld [vmem:[#allocation5 + $0x328] sm:$0xff]
    %v199 = vld [vmem:[#allocation5 + $0x330] sm:$0xff]
    %v200 = vld [vmem:[#allocation5 + $0x338] sm:$0xff]
    %v201 = vld [vmem:[#allocation5 + $0x340] sm:$0xff]
    %v202 = vld [vmem:[#allocation5 + $0x348] sm:$0xff]
    %v203 = vld [vmem:[#allocation5 + $0x350] sm:$0xff]
    %v204 = vld [vmem:[#allocation5 + $0x358] sm:$0xff]
    %v205 = vld [vmem:[#allocation5 + $0x360] sm:$0xff]
    %v206 = vld [vmem:[#allocation5 + $0x368] sm:$0xff]
    %v207 = vld [vmem:[#allocation5 + $0x370] sm:$0xff]
    %v208 = vld [vmem:[#allocation5 + $0x378] sm:$0xff]
    %v209 = vld [vmem:[#allocation5 + $0x380] sm:$0xff]
    %v210 = vld [vmem:[#allocation5 + $0x388] sm:$0xff]
    %v211 = vld [vmem:[#allocation5 + $0x390] sm:$0xff]
    %v212 = vld [vmem:[#allocation5 + $0x398] sm:$0xff]
    %v213 = vld [vmem:[#allocation5 + $0x3a0] sm:$0xff]
    %v214 = vld [vmem:[#allocation5 + $0x3a8] sm:$0xff]
    %v215 = vld [vmem:[#allocation5 + $0x3b0] sm:$0xff]
    %v216 = vld [vmem:[#allocation5 + $0x3b8] sm:$0xff]
    %v217 = vld [vmem:[#allocation5 + $0x3c0] sm:$0xff]
    %v218 = vld [vmem:[#allocation5 + $0x3c8] sm:$0xff]
    %v219 = vld [vmem:[#allocation5 + $0x3d0] sm:$0xff]
    %v220 = vld [vmem:[#allocation5 + $0x3d8] sm:$0xff]
    %v221 = vld [vmem:[#allocation5 + $0x3e0] sm:$0xff]
    %v222 = vld [vmem:[#allocation5 + $0x3e8] sm:$0xff]
    %v223 = vld [vmem:[#allocation5 + $0x3f0] sm:$0xff]
    %v224 = vld [vmem:[#allocation5 + $0x3f8] sm:$0xff]
    %v233 = vunpack.c.l.b16 %v89
    %v234 = vunpack.c.h.b16 %v89
    %v235 = vunpack.c.l.b16 %v90
    %v236 = vunpack.c.h.b16 %v90
    %v237 = vunpack.c.l.b16 %v91
    %v238 = vunpack.c.h.b16 %v91
    %v239 = vunpack.c.l.b16 %v92
    %v240 = vunpack.c.h.b16 %v92
    %v241 = vunpack.c.l.b16 %v93
    %v242 = vunpack.c.h.b16 %v93
    %v243 = vunpack.c.l.b16 %v94
    %v244 = vunpack.c.h.b16 %v94
    %v245 = vunpack.c.l.b16 %v95
    %v246 = vunpack.c.h.b16 %v95
    %v247 = vunpack.c.l.b16 %v96
    %v248 = vunpack.c.h.b16 %v96
    %v249 = vpack.c.b16 %v241, %v233
    %v250 = vpack.c.b16 %v242, %v234
    %v251 = vpack.c.b16 %v243, %v235
    %v252 = vpack.c.b16 %v244, %v236
    %v253 = vpack.c.b16 %v245, %v237
    %v254 = vpack.c.b16 %v246, %v238
    %v255 = vpack.c.b16 %v247, %v239
    %v256 = vpack.c.b16 %v248, %v240
    %v393 = vunpack.c.l.b16 %v97
    %v394 = vunpack.c.h.b16 %v97
    %v395 = vunpack.c.l.b16 %v98
    %v396 = vunpack.c.h.b16 %v98
    %v397 = vunpack.c.l.b16 %v99
    %v398 = vunpack.c.h.b16 %v99
    %v399 = vunpack.c.l.b16 %v100
    %v400 = vunpack.c.h.b16 %v100
    %v401 = vunpack.c.l.b16 %v101
    %v402 = vunpack.c.h.b16 %v101
    %v403 = vunpack.c.l.b16 %v102
    %v404 = vunpack.c.h.b16 %v102
    %v405 = vunpack.c.l.b16 %v103
    %v406 = vunpack.c.h.b16 %v103
    %v407 = vunpack.c.l.b16 %v104
    %v408 = vunpack.c.h.b16 %v104
    %v409 = vunpack.c.l.b16 %v105
    %v410 = vunpack.c.h.b16 %v105
    %v411 = vunpack.c.l.b16 %v106
    %v412 = vunpack.c.h.b16 %v106
    %v413 = vunpack.c.l.b16 %v107
    %v414 = vunpack.c.h.b16 %v107
    %v415 = vunpack.c.l.b16 %v108
    %v416 = vunpack.c.h.b16 %v108
    %v417 = vunpack.c.l.b16 %v109
    %v418 = vunpack.c.h.b16 %v109
    %v419 = vunpack.c.l.b16 %v110
    %v420 = vunpack.c.h.b16 %v110
    %v421 = vunpack.c.l.b16 %v111
    %v422 = vunpack.c.h.b16 %v111
    %v423 = vunpack.c.l.b16 %v112
    %v424 = vunpack.c.h.b16 %v112
    %v425 = vunpack.c.l.b16 %v113
    %v426 = vunpack.c.h.b16 %v113
    %v427 = vunpack.c.l.b16 %v114
    %v428 = vunpack.c.h.b16 %v114
    %v429 = vunpack.c.l.b16 %v115
    %v430 = vunpack.c.h.b16 %v115
    %v431 = vunpack.c.l.b16 %v116
    %v432 = vunpack.c.h.b16 %v116
    %v433 = vunpack.c.l.b16 %v117
    %v434 = vunpack.c.h.b16 %v117
    %v435 = vunpack.c.l.b16 %v118
    %v436 = vunpack.c.h.b16 %v118
    %v437 = vunpack.c.l.b16 %v119
    %v438 = vunpack.c.h.b16 %v119
    %v439 = vunpack.c.l.b16 %v120
    %v440 = vunpack.c.h.b16 %v120
    %v441 = vunpack.c.l.b16 %v121
    %v442 = vunpack.c.h.b16 %v121
    %v443 = vunpack.c.l.b16 %v122
    %v444 = vunpack.c.h.b16 %v122
    %v445 = vunpack.c.l.b16 %v123
    %v446 = vunpack.c.h.b16 %v123
    %v447 = vunpack.c.l.b16 %v124
    %v448 = vunpack.c.h.b16 %v124
    %v449 = vunpack.c.l.b16 %v125
    %v450 = vunpack.c.h.b16 %v125
    %v451 = vunpack.c.l.b16 %v126
    %v452 = vunpack.c.h.b16 %v126
    %v453 = vunpack.c.l.b16 %v127
    %v454 = vunpack.c.h.b16 %v127
    %v455 = vunpack.c.l.b16 %v128
    %v456 = vunpack.c.h.b16 %v128
    %v457 = vunpack.c.l.b16 %v129
    %v458 = vunpack.c.h.b16 %v129
    %v459 = vunpack.c.l.b16 %v130
    %v460 = vunpack.c.h.b16 %v130
    %v461 = vunpack.c.l.b16 %v131
    %v462 = vunpack.c.h.b16 %v131
    %v463 = vunpack.c.l.b16 %v132
    %v464 = vunpack.c.h.b16 %v132
    %v465 = vunpack.c.l.b16 %v133
    %v466 = vunpack.c.h.b16 %v133
    %v467 = vunpack.c.l.b16 %v134
    %v468 = vunpack.c.h.b16 %v134
    %v469 = vunpack.c.l.b16 %v135
    %v470 = vunpack.c.h.b16 %v135
    %v471 = vunpack.c.l.b16 %v136
    %v472 = vunpack.c.h.b16 %v136
    %v473 = vunpack.c.l.b16 %v137
    %v474 = vunpack.c.h.b16 %v137
    %v475 = vunpack.c.l.b16 %v138
    %v476 = vunpack.c.h.b16 %v138
    %v477 = vunpack.c.l.b16 %v139
    %v478 = vunpack.c.h.b16 %v139
    %v479 = vunpack.c.l.b16 %v140
    %v480 = vunpack.c.h.b16 %v140
    %v481 = vunpack.c.l.b16 %v141
    %v482 = vunpack.c.h.b16 %v141
    %v483 = vunpack.c.l.b16 %v142
    %v484 = vunpack.c.h.b16 %v142
    %v485 = vunpack.c.l.b16 %v143
    %v486 = vunpack.c.h.b16 %v143
    %v487 = vunpack.c.l.b16 %v144
    %v488 = vunpack.c.h.b16 %v144
    %v489 = vunpack.c.l.b16 %v145
    %v490 = vunpack.c.h.b16 %v145
    %v491 = vunpack.c.l.b16 %v146
    %v492 = vunpack.c.h.b16 %v146
    %v493 = vunpack.c.l.b16 %v147
    %v494 = vunpack.c.h.b16 %v147
    %v495 = vunpack.c.l.b16 %v148
    %v496 = vunpack.c.h.b16 %v148
    %v497 = vunpack.c.l.b16 %v149
    %v498 = vunpack.c.h.b16 %v149
    %v499 = vunpack.c.l.b16 %v150
    %v500 = vunpack.c.h.b16 %v150
    %v501 = vunpack.c.l.b16 %v151
    %v502 = vunpack.c.h.b16 %v151
    %v503 = vunpack.c.l.b16 %v152
    %v504 = vunpack.c.h.b16 %v152
    %v505 = vunpack.c.l.b16 %v153
    %v506 = vunpack.c.h.b16 %v153
    %v507 = vunpack.c.l.b16 %v154
    %v508 = vunpack.c.h.b16 %v154
    %v509 = vunpack.c.l.b16 %v155
    %v510 = vunpack.c.h.b16 %v155
    %v511 = vunpack.c.l.b16 %v156
    %v512 = vunpack.c.h.b16 %v156
    %v513 = vunpack.c.l.b16 %v157
    %v514 = vunpack.c.h.b16 %v157
    %v515 = vunpack.c.l.b16 %v158
    %v516 = vunpack.c.h.b16 %v158
    %v517 = vunpack.c.l.b16 %v159
    %v518 = vunpack.c.h.b16 %v159
    %v519 = vunpack.c.l.b16 %v160
    %v520 = vunpack.c.h.b16 %v160
    %v521 = vunpack.c.l.b16 %v161
    %v522 = vunpack.c.h.b16 %v161
    %v523 = vunpack.c.l.b16 %v162
    %v524 = vunpack.c.h.b16 %v162
    %v525 = vunpack.c.l.b16 %v163
    %v526 = vunpack.c.h.b16 %v163
    %v527 = vunpack.c.l.b16 %v164
    %v528 = vunpack.c.h.b16 %v164
    %v529 = vunpack.c.l.b16 %v165
    %v530 = vunpack.c.h.b16 %v165
    %v531 = vunpack.c.l.b16 %v166
    %v532 = vunpack.c.h.b16 %v166
    %v533 = vunpack.c.l.b16 %v167
    %v534 = vunpack.c.h.b16 %v167
    %v535 = vunpack.c.l.b16 %v168
    %v536 = vunpack.c.h.b16 %v168
    %v537 = vunpack.c.l.b16 %v169
    %v538 = vunpack.c.h.b16 %v169
    %v539 = vunpack.c.l.b16 %v170
    %v540 = vunpack.c.h.b16 %v170
    %v541 = vunpack.c.l.b16 %v171
    %v542 = vunpack.c.h.b16 %v171
    %v543 = vunpack.c.l.b16 %v172
    %v544 = vunpack.c.h.b16 %v172
    %v545 = vunpack.c.l.b16 %v173
    %v546 = vunpack.c.h.b16 %v173
    %v547 = vunpack.c.l.b16 %v174
    %v548 = vunpack.c.h.b16 %v174
    %v549 = vunpack.c.l.b16 %v175
    %v550 = vunpack.c.h.b16 %v175
    %v551 = vunpack.c.l.b16 %v176
    %v552 = vunpack.c.h.b16 %v176
    %v553 = vunpack.c.l.b16 %v177
    %v554 = vunpack.c.h.b16 %v177
    %v555 = vunpack.c.l.b16 %v178
    %v556 = vunpack.c.h.b16 %v178
    %v557 = vunpack.c.l.b16 %v179
    %v558 = vunpack.c.h.b16 %v179
    %v559 = vunpack.c.l.b16 %v180
    %v560 = vunpack.c.h.b16 %v180
    %v561 = vunpack.c.l.b16 %v181
    %v562 = vunpack.c.h.b16 %v181
    %v563 = vunpack.c.l.b16 %v182
    %v564 = vunpack.c.h.b16 %v182
    %v565 = vunpack.c.l.b16 %v183
    %v566 = vunpack.c.h.b16 %v183
    %v567 = vunpack.c.l.b16 %v184
    %v568 = vunpack.c.h.b16 %v184
    %v569 = vunpack.c.l.b16 %v185
    %v570 = vunpack.c.h.b16 %v185
    %v571 = vunpack.c.l.b16 %v186
    %v572 = vunpack.c.h.b16 %v186
    %v573 = vunpack.c.l.b16 %v187
    %v574 = vunpack.c.h.b16 %v187
    %v575 = vunpack.c.l.b16 %v188
    %v576 = vunpack.c.h.b16 %v188
    %v577 = vunpack.c.l.b16 %v189
    %v578 = vunpack.c.h.b16 %v189
    %v579 = vunpack.c.l.b16 %v190
    %v580 = vunpack.c.h.b16 %v190
    %v581 = vunpack.c.l.b16 %v191
    %v582 = vunpack.c.h.b16 %v191
    %v583 = vunpack.c.l.b16 %v192
    %v584 = vunpack.c.h.b16 %v192
    %v585 = vunpack.c.l.b16 %v193
    %v586 = vunpack.c.h.b16 %v193
    %v587 = vunpack.c.l.b16 %v194
    %v588 = vunpack.c.h.b16 %v194
    %v589 = vunpack.c.l.b16 %v195
    %v590 = vunpack.c.h.b16 %v195
    %v591 = vunpack.c.l.b16 %v196
    %v592 = vunpack.c.h.b16 %v196
    %v593 = vunpack.c.l.b16 %v197
    %v594 = vunpack.c.h.b16 %v197
    %v595 = vunpack.c.l.b16 %v198
    %v596 = vunpack.c.h.b16 %v198
    %v597 = vunpack.c.l.b16 %v199
    %v598 = vunpack.c.h.b16 %v199
    %v599 = vunpack.c.l.b16 %v200
    %v600 = vunpack.c.h.b16 %v200
    %v601 = vunpack.c.l.b16 %v201
    %v602 = vunpack.c.h.b16 %v201
    %v603 = vunpack.c.l.b16 %v202
    %v604 = vunpack.c.h.b16 %v202
    %v605 = vunpack.c.l.b16 %v203
    %v606 = vunpack.c.h.b16 %v203
    %v607 = vunpack.c.l.b16 %v204
    %v608 = vunpack.c.h.b16 %v204
    %v609 = vunpack.c.l.b16 %v205
    %v610 = vunpack.c.h.b16 %v205
    %v611 = vunpack.c.l.b16 %v206
    %v612 = vunpack.c.h.b16 %v206
    %v613 = vunpack.c.l.b16 %v207
    %v614 = vunpack.c.h.b16 %v207
    %v615 = vunpack.c.l.b16 %v208
    %v616 = vunpack.c.h.b16 %v208
    %v617 = vunpack.c.l.b16 %v209
    %v618 = vunpack.c.h.b16 %v209
    %v619 = vunpack.c.l.b16 %v210
    %v620 = vunpack.c.h.b16 %v210
    %v621 = vunpack.c.l.b16 %v211
    %v622 = vunpack.c.h.b16 %v211
    %v623 = vunpack.c.l.b16 %v212
    %v624 = vunpack.c.h.b16 %v212
    %v625 = vunpack.c.l.b16 %v213
    %v626 = vunpack.c.h.b16 %v213
    %v627 = vunpack.c.l.b16 %v214
    %v628 = vunpack.c.h.b16 %v214
    %v629 = vunpack.c.l.b16 %v215
    %v630 = vunpack.c.h.b16 %v215
    %v631 = vunpack.c.l.b16 %v216
    %v632 = vunpack.c.h.b16 %v216
    %v633 = vunpack.c.l.b16 %v217
    %v634 = vunpack.c.h.b16 %v217
    %v635 = vunpack.c.l.b16 %v218
    %v636 = vunpack.c.h.b16 %v218
    %v637 = vunpack.c.l.b16 %v219
    %v638 = vunpack.c.h.b16 %v219
    %v639 = vunpack.c.l.b16 %v220
    %v640 = vunpack.c.h.b16 %v220
    %v641 = vunpack.c.l.b16 %v221
    %v642 = vunpack.c.h.b16 %v221
    %v643 = vunpack.c.l.b16 %v222
    %v644 = vunpack.c.h.b16 %v222
    %v645 = vunpack.c.l.b16 %v223
    %v646 = vunpack.c.h.b16 %v223
    %v647 = vunpack.c.l.b16 %v224
    %v648 = vunpack.c.h.b16 %v224
    %v649 = vpack.c.b16 %v395, %v393
    %v650 = vpack.c.b16 %v396, %v394
    %v651 = vpack.c.b16 %v399, %v397
    %v652 = vpack.c.b16 %v400, %v398
    %v653 = vpack.c.b16 %v403, %v401
    %v654 = vpack.c.b16 %v404, %v402
    %v655 = vpack.c.b16 %v407, %v405
    %v656 = vpack.c.b16 %v408, %v406
    %v657 = vpack.c.b16 %v411, %v409
    %v658 = vpack.c.b16 %v412, %v410
    %v659 = vpack.c.b16 %v415, %v413
    %v660 = vpack.c.b16 %v416, %v414
    %v661 = vpack.c.b16 %v419, %v417
    %v662 = vpack.c.b16 %v420, %v418
    %v663 = vpack.c.b16 %v423, %v421
    %v664 = vpack.c.b16 %v424, %v422
    %v665 = vpack.c.b16 %v427, %v425
    %v666 = vpack.c.b16 %v428, %v426
    %v667 = vpack.c.b16 %v431, %v429
    %v668 = vpack.c.b16 %v432, %v430
    %v669 = vpack.c.b16 %v435, %v433
    %v670 = vpack.c.b16 %v436, %v434
    %v671 = vpack.c.b16 %v439, %v437
    %v672 = vpack.c.b16 %v440, %v438
    %v673 = vpack.c.b16 %v443, %v441
    %v674 = vpack.c.b16 %v444, %v442
    %v675 = vpack.c.b16 %v447, %v445
    %v676 = vpack.c.b16 %v448, %v446
    %v677 = vpack.c.b16 %v451, %v449
    %v678 = vpack.c.b16 %v452, %v450
    %v679 = vpack.c.b16 %v455, %v453
    %v680 = vpack.c.b16 %v456, %v454
    %v681 = vpack.c.b16 %v459, %v457
    %v682 = vpack.c.b16 %v460, %v458
    %v683 = vpack.c.b16 %v463, %v461
    %v684 = vpack.c.b16 %v464, %v462
    %v685 = vpack.c.b16 %v467, %v465
    %v686 = vpack.c.b16 %v468, %v466
    %v687 = vpack.c.b16 %v471, %v469
    %v688 = vpack.c.b16 %v472, %v470
    %v689 = vpack.c.b16 %v475, %v473
    %v690 = vpack.c.b16 %v476, %v474
    %v691 = vpack.c.b16 %v479, %v477
    %v692 = vpack.c.b16 %v480, %v478
    %v693 = vpack.c.b16 %v483, %v481
    %v694 = vpack.c.b16 %v484, %v482
    %v695 = vpack.c.b16 %v487, %v485
    %v696 = vpack.c.b16 %v488, %v486
    %v697 = vpack.c.b16 %v491, %v489
    %v698 = vpack.c.b16 %v492, %v490
    %v699 = vpack.c.b16 %v495, %v493
    %v700 = vpack.c.b16 %v496, %v494
    %v701 = vpack.c.b16 %v499, %v497
    %v702 = vpack.c.b16 %v500, %v498
    %v703 = vpack.c.b16 %v503, %v501
    %v704 = vpack.c.b16 %v504, %v502
    %v705 = vpack.c.b16 %v507, %v505
    %v706 = vpack.c.b16 %v508, %v506
    %v707 = vpack.c.b16 %v511, %v509
    %v708 = vpack.c.b16 %v512, %v510
    %v709 = vpack.c.b16 %v515, %v513
    %v710 = vpack.c.b16 %v516, %v514
    %v711 = vpack.c.b16 %v519, %v517
    %v712 = vpack.c.b16 %v520, %v518
    %v713 = vpack.c.b16 %v523, %v521
    %v714 = vpack.c.b16 %v524, %v522
    %v715 = vpack.c.b16 %v527, %v525
    %v716 = vpack.c.b16 %v528, %v526
    %v717 = vpack.c.b16 %v531, %v529
    %v718 = vpack.c.b16 %v532, %v530
    %v719 = vpack.c.b16 %v535, %v533
    %v720 = vpack.c.b16 %v536, %v534
    %v721 = vpack.c.b16 %v539, %v537
    %v722 = vpack.c.b16 %v540, %v538
    %v723 = vpack.c.b16 %v543, %v541
    %v724 = vpack.c.b16 %v544, %v542
    %v725 = vpack.c.b16 %v547, %v545
    %v726 = vpack.c.b16 %v548, %v546
    %v727 = vpack.c.b16 %v551, %v549
    %v728 = vpack.c.b16 %v552, %v550
    %v729 = vpack.c.b16 %v555, %v553
    %v730 = vpack.c.b16 %v556, %v554
    %v731 = vpack.c.b16 %v559, %v557
    %v732 = vpack.c.b16 %v560, %v558
    %v733 = vpack.c.b16 %v563, %v561
    %v734 = vpack.c.b16 %v564, %v562
    %v735 = vpack.c.b16 %v567, %v565
    %v736 = vpack.c.b16 %v568, %v566
    %v737 = vpack.c.b16 %v571, %v569
    %v738 = vpack.c.b16 %v572, %v570
    %v739 = vpack.c.b16 %v575, %v573
    %v740 = vpack.c.b16 %v576, %v574
    %v741 = vpack.c.b16 %v579, %v577
    %v742 = vpack.c.b16 %v580, %v578
    %v743 = vpack.c.b16 %v583, %v581
    %v744 = vpack.c.b16 %v584, %v582
    %v745 = vpack.c.b16 %v587, %v585
    %v746 = vpack.c.b16 %v588, %v586
    %v747 = vpack.c.b16 %v591, %v589
    %v748 = vpack.c.b16 %v592, %v590
    %v749 = vpack.c.b16 %v595, %v593
    %v750 = vpack.c.b16 %v596, %v594
    %v751 = vpack.c.b16 %v599, %v597
    %v752 = vpack.c.b16 %v600, %v598
    %v753 = vpack.c.b16 %v603, %v601
    %v754 = vpack.c.b16 %v604, %v602
    %v755 = vpack.c.b16 %v607, %v605
    %v756 = vpack.c.b16 %v608, %v606
    %v757 = vpack.c.b16 %v611, %v609
    %v758 = vpack.c.b16 %v612, %v610
    %v759 = vpack.c.b16 %v615, %v613
    %v760 = vpack.c.b16 %v616, %v614
    %v761 = vpack.c.b16 %v619, %v617
    %v762 = vpack.c.b16 %v620, %v618
    %v763 = vpack.c.b16 %v623, %v621
    %v764 = vpack.c.b16 %v624, %v622
    %v765 = vpack.c.b16 %v627, %v625
    %v766 = vpack.c.b16 %v628, %v626
    %v767 = vpack.c.b16 %v631, %v629
    %v768 = vpack.c.b16 %v632, %v630
    %v769 = vpack.c.b16 %v635, %v633
    %v770 = vpack.c.b16 %v636, %v634
    %v771 = vpack.c.b16 %v639, %v637
    %v772 = vpack.c.b16 %v640, %v638
    %v773 = vpack.c.b16 %v643, %v641
    %v774 = vpack.c.b16 %v644, %v642
    %v775 = vpack.c.b16 %v647, %v645
    %v776 = vpack.c.b16 %v648, %v646
    %905 = vmatprep.subr.bf16.mxu0 %v650
    %906 = vmatpush1.bf16.msra.mxu0 %v649
    %907 = vmatprep.subr.bf16.mxu0 %v652
    %908 = vmatpush1.bf16.msra.mxu0 %v651
    %909 = vmatprep.subr.bf16.mxu0 %v654
    %910 = vmatpush1.bf16.msra.mxu0 %v653
    %911 = vmatprep.subr.bf16.mxu0 %v656
    %912 = vmatpush1.bf16.msra.mxu0 %v655
    %913 = vmatprep.subr.bf16.mxu0 %v658
    %914 = vmatpush1.bf16.msra.mxu0 %v657
    %915 = vmatprep.subr.bf16.mxu0 %v660
    %916 = vmatpush1.bf16.msra.mxu0 %v659
    %917 = vmatprep.subr.bf16.mxu0 %v662
    %918 = vmatpush1.bf16.msra.mxu0 %v661
    %919 = vmatprep.subr.bf16.mxu0 %v664
    %920 = vmatpush1.bf16.msra.mxu0 %v663
    %921 = vmatprep.subr.bf16.mxu0 %v666
    %922 = vmatpush1.bf16.msra.mxu0 %v665
    %923 = vmatprep.subr.bf16.mxu0 %v668
    %924 = vmatpush1.bf16.msra.mxu0 %v667
    %925 = vmatprep.subr.bf16.mxu0 %v670
    %926 = vmatpush1.bf16.msra.mxu0 %v669
    %927 = vmatprep.subr.bf16.mxu0 %v672
    %928 = vmatpush1.bf16.msra.mxu0 %v671
    %929 = vmatprep.subr.bf16.mxu0 %v674
    %930 = vmatpush1.bf16.msra.mxu0 %v673
    %931 = vmatprep.subr.bf16.mxu0 %v676
    %932 = vmatpush1.bf16.msra.mxu0 %v675
    %933 = vmatprep.subr.bf16.mxu0 %v678
    %934 = vmatpush1.bf16.msra.mxu0 %v677
    %935 = vmatprep.subr.bf16.mxu0 %v680
    %936 = vmatpush1.bf16.msra.mxu0 %v679
    %937 = vmatprep.mubr.bf16.mxu0 %v250
    %938 = vmatmul.mubr.bf16.gmra.mrb[0].mxu0 %v249
    %v939 = vpop.f32.mrb[0].mxu0
    %v940 = vadd.f32 0.0, %v939
    %v941 = vpop.f32.mrb[0].mxu0
    %v942 = vadd.f32 0.0, %v941
    %v943 = vpop.f32.mrb[0].mxu0
    %v944 = vadd.f32 0.0, %v943
    %v945 = vpop.f32.mrb[0].mxu0
    %v946 = vadd.f32 0.0, %v945
    %947 = vdwg.mxu0
    %948 = vmatprep.subr.bf16.mxu0 %v682
    %949 = vmatpush1.bf16.msra.mxu0 %v681
    %950 = vmatprep.subr.bf16.mxu0 %v684
    %951 = vmatpush1.bf16.msra.mxu0 %v683
    %952 = vmatprep.subr.bf16.mxu0 %v686
    %953 = vmatpush1.bf16.msra.mxu0 %v685
    %954 = vmatprep.subr.bf16.mxu0 %v688
    %955 = vmatpush1.bf16.msra.mxu0 %v687
    %956 = vmatprep.subr.bf16.mxu0 %v690
    %957 = vmatpush1.bf16.msra.mxu0 %v689
    %958 = vmatprep.subr.bf16.mxu0 %v692
    %959 = vmatpush1.bf16.msra.mxu0 %v691
    %960 = vmatprep.subr.bf16.mxu0 %v694
    %961 = vmatpush1.bf16.msra.mxu0 %v693
    %962 = vmatprep.subr.bf16.mxu0 %v696
    %963 = vmatpush1.bf16.msra.mxu0 %v695
    %964 = vmatprep.subr.bf16.mxu0 %v698
    %965 = vmatpush1.bf16.msra.mxu0 %v697
    %966 = vmatprep.subr.bf16.mxu0 %v700
    %967 = vmatpush1.bf16.msra.mxu0 %v699
    %968 = vmatprep.subr.bf16.mxu0 %v702
    %969 = vmatpush1.bf16.msra.mxu0 %v701
    %970 = vmatprep.subr.bf16.mxu0 %v704
    %971 = vmatpush1.bf16.msra.mxu0 %v703
    %972 = vmatprep.subr.bf16.mxu0 %v706
    %973 = vmatpush1.bf16.msra.mxu0 %v705
    %974 = vmatprep.subr.bf16.mxu0 %v708
    %975 = vmatpush1.bf16.msra.mxu0 %v707
    %976 = vmatprep.subr.bf16.mxu0 %v710
    %977 = vmatpush1.bf16.msra.mxu0 %v709
    %978 = vmatprep.subr.bf16.mxu0 %v712
    %979 = vmatpush1.bf16.msra.mxu0 %v711
    %980 = vmatprep.mubr.bf16.mxu0 %v252
    %981 = vmatmul.mubr.bf16.gmra.mrb[0].mxu0 %v251
    %v982 = vpop.f32.mrb[0].mxu0
    %v983 = vadd.f32 %v940, %v982
    %v984 = vpop.f32.mrb[0].mxu0
    %v985 = vadd.f32 %v942, %v984
    %v986 = vpop.f32.mrb[0].mxu0
    %v987 = vadd.f32 %v944, %v986
    %v988 = vpop.f32.mrb[0].mxu0
    %v989 = vadd.f32 %v946, %v988
    %990 = vdwg.mxu0
    %991 = vmatprep.subr.bf16.mxu0 %v714
    %992 = vmatpush1.bf16.msra.mxu0 %v713
    %993 = vmatprep.subr.bf16.mxu0 %v716
    %994 = vmatpush1.bf16.msra.mxu0 %v715
    %995 = vmatprep.subr.bf16.mxu0 %v718
    %996 = vmatpush1.bf16.msra.mxu0 %v717
    %997 = vmatprep.subr.bf16.mxu0 %v720
    %998 = vmatpush1.bf16.msra.mxu0 %v719
    %999 = vmatprep.subr.bf16.mxu0 %v722
    %1000 = vmatpush1.bf16.msra.mxu0 %v721
    %1001 = vmatprep.subr.bf16.mxu0 %v724
    %1002 = vmatpush1.bf16.msra.mxu0 %v723
    %1003 = vmatprep.subr.bf16.mxu0 %v726
    %1004 = vmatpush1.bf16.msra.mxu0 %v725
    %1005 = vmatprep.subr.bf16.mxu0 %v728
    %1006 = vmatpush1.bf16.msra.mxu0 %v727
    %1007 = vmatprep.subr.bf16.mxu0 %v730
    %1008 = vmatpush1.bf16.msra.mxu0 %v729
    %1009 = vmatprep.subr.bf16.mxu0 %v732
    %1010 = vmatpush1.bf16.msra.mxu0 %v731
    %1011 = vmatprep.subr.bf16.mxu0 %v734
    %1012 = vmatpush1.bf16.msra.mxu0 %v733
    %1013 = vmatprep.subr.bf16.mxu0 %v736
    %1014 = vmatpush1.bf16.msra.mxu0 %v735
    %1015 = vmatprep.subr.bf16.mxu0 %v738
    %1016 = vmatpush1.bf16.msra.mxu0 %v737
    %1017 = vmatprep.subr.bf16.mxu0 %v740
    %1018 = vmatpush1.bf16.msra.mxu0 %v739
    %1019 = vmatprep.subr.bf16.mxu0 %v742
    %1020 = vmatpush1.bf16.msra.mxu0 %v741
    %1021 = vmatprep.subr.bf16.mxu0 %v744
    %1022 = vmatpush1.bf16.msra.mxu0 %v743
    %1023 = vmatprep.mubr.bf16.mxu0 %v254
    %1024 = vmatmul.mubr.bf16.gmra.mrb[0].mxu0 %v253
    %v1025 = vpop.f32.mrb[0].mxu0
    %v1026 = vadd.f32 %v983, %v1025
    %v1027 = vpop.f32.mrb[0].mxu0
    %v1028 = vadd.f32 %v985, %v1027
    %v1029 = vpop.f32.mrb[0].mxu0
    %v1030 = vadd.f32 %v987, %v1029
    %v1031 = vpop.f32.mrb[0].mxu0
    %v1032 = vadd.f32 %v989, %v1031
    %1033 = vdwg.mxu0
    %1034 = vmatprep.subr.bf16.mxu0 %v746
    %1035 = vmatpush1.bf16.msra.mxu0 %v745
    %1036 = vmatprep.subr.bf16.mxu0 %v748
    %1037 = vmatpush1.bf16.msra.mxu0 %v747
    %1038 = vmatprep.subr.bf16.mxu0 %v750
    %1039 = vmatpush1.bf16.msra.mxu0 %v749
    %1040 = vmatprep.subr.bf16.mxu0 %v752
    %1041 = vmatpush1.bf16.msra.mxu0 %v751
    %1042 = vmatprep.subr.bf16.mxu0 %v754
    %1043 = vmatpush1.bf16.msra.mxu0 %v753
    %1044 = vmatprep.subr.bf16.mxu0 %v756
    %1045 = vmatpush1.bf16.msra.mxu0 %v755
    %1046 = vmatprep.subr.bf16.mxu0 %v758
    %1047 = vmatpush1.bf16.msra.mxu0 %v757
    %1048 = vmatprep.subr.bf16.mxu0 %v760
    %1049 = vmatpush1.bf16.msra.mxu0 %v759
    %1050 = vmatprep.subr.bf16.mxu0 %v762
    %1051 = vmatpush1.bf16.msra.mxu0 %v761
    %1052 = vmatprep.subr.bf16.mxu0 %v764
    %1053 = vmatpush1.bf16.msra.mxu0 %v763
    %1054 = vmatprep.subr.bf16.mxu0 %v766
    %1055 = vmatpush1.bf16.msra.mxu0 %v765
    %1056 = vmatprep.subr.bf16.mxu0 %v768
    %1057 = vmatpush1.bf16.msra.mxu0 %v767
    %1058 = vmatprep.subr.bf16.mxu0 %v770
    %1059 = vmatpush1.bf16.msra.mxu0 %v769
    %1060 = vmatprep.subr.bf16.mxu0 %v772
    %1061 = vmatpush1.bf16.msra.mxu0 %v771
    %1062 = vmatprep.subr.bf16.mxu0 %v774
    %1063 = vmatpush1.bf16.msra.mxu0 %v773
    %1064 = vmatprep.subr.bf16.mxu0 %v776
    %1065 = vmatpush1.bf16.msra.mxu0 %v775
    %1066 = vmatprep.mubr.bf16.mxu0 %v256
    %1067 = vmatmul.mubr.bf16.gmra.mrb[0].mxu0 %v255
    %v1068 = vpop.f32.mrb[0].mxu0
    %v1069 = vadd.f32 %v1026, %v1068
    %v1070 = vpop.f32.mrb[0].mxu0
    %v1071 = vadd.f32 %v1028, %v1070
    %v1072 = vpop.f32.mrb[0].mxu0
    %v1073 = vadd.f32 %v1030, %v1072
    %v1074 = vpop.f32.mrb[0].mxu0
    %v1075 = vadd.f32 %v1032, %v1074
    %1076 = vdwg.mxu0
    %v1077 = vld [vmem:[%s2] sm:$0x3]
    %v1079 = vlaneseq
    %v1080 = vshrl.u32 %v1079, 7
    %v1081 = vsub.s32 0, %v1080
    %v1082 = vrot.slane %v1077, %v1081
    %v1083 = vlaneseq
    %v1084 = vshrl.u32 %v1083, 7
    %v1085 = vsub.s32 1, %v1084
    %v1086 = vrot.slane %v1077, %v1085
    %v1089 = vmul.f32 %v1069, %v1082
    %v1090 = vmul.f32 %v1071, %v1086
    %v1091 = vmul.f32 %v1073, %v1082
    %v1092 = vmul.f32 %v1075, %v1086
    %v1093 = vld [vmem:[%s3] sm:$0x3]
    %v1095 = vlaneseq
    %v1096 = vshrl.u32 %v1095, 7
    %v1097 = vsub.s32 0, %v1096
    %v1098 = vrot.slane %v1093, %v1097
    %v1099 = vlaneseq
    %v1100 = vshrl.u32 %v1099, 7
    %v1101 = vsub.s32 1, %v1100
    %v1102 = vrot.slane %v1093, %v1101
    %v1105 = vadd.f32 %v1089, %v1098
    %v1106 = vadd.f32 %v1090, %v1102
    %v1107 = vadd.f32 %v1091, %v1098
    %v1108 = vadd.f32 %v1092, %v1102
    %v1109 = vmax.f32 %v1105, -1.0
    %v1110 = vmax.f32 %v1106, -1.0
    %v1111 = vmax.f32 %v1107, -1.0
    %v1112 = vmax.f32 %v1108, -1.0
    %v1113 = vmin.f32 %v1109, 1.0
    %v1114 = vmin.f32 %v1110, 1.0
    %v1115 = vmin.f32 %v1111, 1.0
    %v1116 = vmin.f32 %v1112, 1.0
    %v1117 = vpack.c.bf16 %v1115, %v1113
    %v1118 = vpack.c.bf16 %v1116, %v1114
    %v1119 = vld [vmem:[#allocation7] sm:$0xf]
    %v1120 = vld [vmem:[#allocation7 + $0x4] sm:$0xf]
    %v1121 = vld [vmem:[#allocation7 + $0x8] sm:$0xf]
    %v1122 = vld [vmem:[#allocation7 + $0xc] sm:$0xf]
    %v1123 = vld [vmem:[#allocation7 + $0x10] sm:$0xf]
    %v1124 = vld [vmem:[#allocation7 + $0x14] sm:$0xf]
    %v1125 = vld [vmem:[#allocation7 + $0x18] sm:$0xf]
    %v1126 = vld [vmem:[#allocation7 + $0x1c] sm:$0xf]
    %v1127 = vld [vmem:[#allocation7 + $0x20] sm:$0xf]
    %v1128 = vld [vmem:[#allocation7 + $0x24] sm:$0xf]
    %v1129 = vld [vmem:[#allocation7 + $0x28] sm:$0xf]
    %v1130 = vld [vmem:[#allocation7 + $0x2c] sm:$0xf]
    %v1131 = vld [vmem:[#allocation7 + $0x30] sm:$0xf]
    %v1132 = vld [vmem:[#allocation7 + $0x34] sm:$0xf]
    %v1133 = vld [vmem:[#allocation7 + $0x38] sm:$0xf]
    %v1134 = vld [vmem:[#allocation7 + $0x3c] sm:$0xf]
    %v1135 = vld [vmem:[#allocation7 + $0x40] sm:$0xf]
    %v1136 = vld [vmem:[#allocation7 + $0x44] sm:$0xf]
    %v1137 = vld [vmem:[#allocation7 + $0x48] sm:$0xf]
    %v1138 = vld [vmem:[#allocation7 + $0x4c] sm:$0xf]
    %v1139 = vld [vmem:[#allocation7 + $0x50] sm:$0xf]
    %v1140 = vld [vmem:[#allocation7 + $0x54] sm:$0xf]
    %v1141 = vld [vmem:[#allocation7 + $0x58] sm:$0xf]
    %v1142 = vld [vmem:[#allocation7 + $0x5c] sm:$0xf]
    %v1143 = vld [vmem:[#allocation7 + $0x60] sm:$0xf]
    %v1144 = vld [vmem:[#allocation7 + $0x64] sm:$0xf]
    %v1145 = vld [vmem:[#allocation7 + $0x68] sm:$0xf]
    %v1146 = vld [vmem:[#allocation7 + $0x6c] sm:$0xf]
    %v1147 = vld [vmem:[#allocation7 + $0x70] sm:$0xf]
    %v1148 = vld [vmem:[#allocation7 + $0x74] sm:$0xf]
    %v1149 = vld [vmem:[#allocation7 + $0x78] sm:$0xf]
    %v1150 = vld [vmem:[#allocation7 + $0x7c] sm:$0xf]
    %v1183 = vunpack.c.l.b16 %v1119
    %v1184 = vunpack.c.l.b16 %v1120
    %v1185 = vunpack.c.l.b16 %v1121
    %v1186 = vunpack.c.l.b16 %v1122
    %v1187 = vunpack.c.l.b16 %v1123
    %v1188 = vunpack.c.l.b16 %v1124
    %v1189 = vunpack.c.l.b16 %v1125
    %v1190 = vunpack.c.l.b16 %v1126
    %v1191 = vunpack.c.l.b16 %v1127
    %v1192 = vunpack.c.l.b16 %v1128
    %v1193 = vunpack.c.l.b16 %v1129
    %v1194 = vunpack.c.l.b16 %v1130
    %v1195 = vunpack.c.l.b16 %v1131
    %v1196 = vunpack.c.l.b16 %v1132
    %v1197 = vunpack.c.l.b16 %v1133
    %v1198 = vunpack.c.l.b16 %v1134
    %v1199 = vunpack.c.l.b16 %v1135
    %v1200 = vunpack.c.l.b16 %v1136
    %v1201 = vunpack.c.l.b16 %v1137
    %v1202 = vunpack.c.l.b16 %v1138
    %v1203 = vunpack.c.l.b16 %v1139
    %v1204 = vunpack.c.l.b16 %v1140
    %v1205 = vunpack.c.l.b16 %v1141
    %v1206 = vunpack.c.l.b16 %v1142
    %v1207 = vunpack.c.l.b16 %v1143
    %v1208 = vunpack.c.l.b16 %v1144
    %v1209 = vunpack.c.l.b16 %v1145
    %v1210 = vunpack.c.l.b16 %v1146
    %v1211 = vunpack.c.l.b16 %v1147
    %v1212 = vunpack.c.l.b16 %v1148
    %v1213 = vunpack.c.l.b16 %v1149
    %v1214 = vunpack.c.l.b16 %v1150
    %v1215 = vpack.c.b16 %v1184, %v1183
    %v1216 = vpack.c.b16 %v1186, %v1185
    %v1217 = vpack.c.b16 %v1188, %v1187
    %v1218 = vpack.c.b16 %v1190, %v1189
    %v1219 = vpack.c.b16 %v1192, %v1191
    %v1220 = vpack.c.b16 %v1194, %v1193
    %v1221 = vpack.c.b16 %v1196, %v1195
    %v1222 = vpack.c.b16 %v1198, %v1197
    %v1223 = vpack.c.b16 %v1200, %v1199
    %v1224 = vpack.c.b16 %v1202, %v1201
    %v1225 = vpack.c.b16 %v1204, %v1203
    %v1226 = vpack.c.b16 %v1206, %v1205
    %v1227 = vpack.c.b16 %v1208, %v1207
    %v1228 = vpack.c.b16 %v1210, %v1209
    %v1229 = vpack.c.b16 %v1212, %v1211
    %v1230 = vpack.c.b16 %v1214, %v1213
    %1247 = vmatprep.subr.bf16.mxu0 0
    %1248 = vmatpush1.bf16.msra.mxu0 %v1215
    %1249 = vmatprep.subr.bf16.mxu0 0
    %1250 = vmatpush1.bf16.msra.mxu0 %v1216
    %1251 = vmatprep.subr.bf16.mxu0 0
    %1252 = vmatpush1.bf16.msra.mxu0 %v1217
    %1253 = vmatprep.subr.bf16.mxu0 0
    %1254 = vmatpush1.bf16.msra.mxu0 %v1218
    %1255 = vmatprep.subr.bf16.mxu0 0
    %1256 = vmatpush1.bf16.msra.mxu0 %v1219
    %1257 = vmatprep.subr.bf16.mxu0 0
    %1258 = vmatpush1.bf16.msra.mxu0 %v1220
    %1259 = vmatprep.subr.bf16.mxu0 0
    %1260 = vmatpush1.bf16.msra.mxu0 %v1221
    %1261 = vmatprep.subr.bf16.mxu0 0
    %1262 = vmatpush1.bf16.msra.mxu0 %v1222
    %1263 = vmatprep.subr.bf16.mxu0 0
    %1264 = vmatpush1.bf16.msra.mxu0 %v1223
    %1265 = vmatprep.subr.bf16.mxu0 0
    %1266 = vmatpush1.bf16.msra.mxu0 %v1224
    %1267 = vmatprep.subr.bf16.mxu0 0
    %1268 = vmatpush1.bf16.msra.mxu0 %v1225
    %1269 = vmatprep.subr.bf16.mxu0 0
    %1270 = vmatpush1.bf16.msra.mxu0 %v1226
    %1271 = vmatprep.subr.bf16.mxu0 0
    %1272 = vmatpush1.bf16.msra.mxu0 %v1227
    %1273 = vmatprep.subr.bf16.mxu0 0
    %1274 = vmatpush1.bf16.msra.mxu0 %v1228
    %1275 = vmatprep.subr.bf16.mxu0 0
    %1276 = vmatpush1.bf16.msra.mxu0 %v1229
    %1277 = vmatprep.subr.bf16.mxu0 0
    %1278 = vmatpush1.bf16.msra.mxu0 %v1230
    %1279 = vmatprep.mubr.bf16.mxu0 %v1118
    %1280 = vmatmul.mubr.bf16.gmra.mrb[0].mxu0 %v1117
    %v1281 = vpop.f32.mrb[0].mxu0
    %v1282 = vadd.f32 0.0, %v1281
    %v1283 = vpop.f32.mrb[0].mxu0
    %v1284 = vpop.f32.mrb[0].mxu0
    %v1285 = vadd.f32 0.0, %v1284
    %v1286 = vpop.f32.mrb[0].mxu0
    %1287 = vdwg.mxu0
    %v1288 = vld [vmem:[%s5] sm:$0x1]
    %v1290 = vlaneseq
    %v1291 = vshrl.u32 %v1290, 7
    %v1292 = vsub.s32 0, %v1291
    %v1293 = vrot.slane %v1288, %v1292
    %v1295 = vmul.f32 %v1282, %v1293
    %v1296 = vmul.f32 %v1285, %v1293
    %v1297 = vld [vmem:[%s6] sm:$0x1]
    %v1299 = vlaneseq
    %v1300 = vshrl.u32 %v1299, 7
    %v1301 = vsub.s32 0, %v1300
    %v1302 = vrot.slane %v1297, %v1301
    %v1304 = vadd.f32 %v1295, %v1302
    %v1305 = vadd.f32 %v1296, %v1302
    %v1306 = vmax.f32 %v1304, -1.0
    %v1307 = vmax.f32 %v1305, -1.0
    %v1308 = vmin.f32 %v1306, 1.0
    %v1309 = vmin.f32 %v1307, 1.0
    %v1310 = vpack.c.bf16 %v1309, %v1308
    %v1311 = vld [vmem:[#allocation8] sm:$0xf]
    %v1312 = vld [vmem:[#allocation8 + $0x4] sm:$0xf]
    %v1313 = vld [vmem:[#allocation8 + $0x8] sm:$0xf]
    %v1314 = vld [vmem:[#allocation8 + $0xc] sm:$0xf]
    %v1315 = vld [vmem:[#allocation8 + $0x10] sm:$0xf]
    %v1316 = vld [vmem:[#allocation8 + $0x14] sm:$0xf]
    %v1317 = vld [vmem:[#allocation8 + $0x18] sm:$0xf]
    %v1318 = vld [vmem:[#allocation8 + $0x1c] sm:$0xf]
    %v1319 = vld [vmem:[#allocation8 + $0x20] sm:$0xf]
    %v1320 = vld [vmem:[#allocation8 + $0x24] sm:$0xf]
    %v1321 = vld [vmem:[#allocation8 + $0x28] sm:$0xf]
    %v1322 = vld [vmem:[#allocation8 + $0x2c] sm:$0xf]
    %v1323 = vld [vmem:[#allocation8 + $0x30] sm:$0xf]
    %v1324 = vld [vmem:[#allocation8 + $0x34] sm:$0xf]
    %v1325 = vld [vmem:[#allocation8 + $0x38] sm:$0xf]
    %v1326 = vld [vmem:[#allocation8 + $0x3c] sm:$0xf]
    %v1327 = vld [vmem:[%s8] sm:$0x1]
    %v1329 = vlaneseq
    %v1330 = vshrl.u32 %v1329, 7
    %v1331 = vsub.s32 0, %v1330
    %v1332 = vrot.slane %v1327, %v1331
    %v1350 = vunpack.c.l.b16 %v1311
    %v1351 = vunpack.c.l.b16 %v1312
    %v1352 = vunpack.c.l.b16 %v1313
    %v1353 = vunpack.c.l.b16 %v1314
    %v1354 = vunpack.c.l.b16 %v1315
    %v1355 = vunpack.c.l.b16 %v1316
    %v1356 = vunpack.c.l.b16 %v1317
    %v1357 = vunpack.c.l.b16 %v1318
    %v1358 = vunpack.c.l.b16 %v1319
    %v1359 = vunpack.c.l.b16 %v1320
    %v1360 = vunpack.c.l.b16 %v1321
    %v1361 = vunpack.c.l.b16 %v1322
    %v1362 = vunpack.c.l.b16 %v1323
    %v1363 = vunpack.c.l.b16 %v1324
    %v1364 = vunpack.c.l.b16 %v1325
    %v1365 = vunpack.c.l.b16 %v1326
    %v1366 = vpack.c.b16 %v1351, %v1350
    %v1367 = vpack.c.b16 %v1353, %v1352
    %v1368 = vpack.c.b16 %v1355, %v1354
    %v1369 = vpack.c.b16 %v1357, %v1356
    %v1370 = vpack.c.b16 %v1359, %v1358
    %v1371 = vpack.c.b16 %v1361, %v1360
    %v1372 = vpack.c.b16 %v1363, %v1362
    %v1373 = vpack.c.b16 %v1365, %v1364
    %1382 = vmatprep.subr.bf16.mxu0 0
    %1383 = vmatpush1.bf16.msra.mxu0 %v1366
    %1384 = vmatprep.subr.bf16.mxu0 0
    %1385 = vmatpush1.bf16.msra.mxu0 %v1367
    %1386 = vmatprep.subr.bf16.mxu0 0
    %1387 = vmatpush1.bf16.msra.mxu0 %v1368
    %1388 = vmatprep.subr.bf16.mxu0 0
    %1389 = vmatpush1.bf16.msra.mxu0 %v1369
    %1390 = vmatprep.subr.bf16.mxu0 0
    %1391 = vmatpush1.bf16.msra.mxu0 %v1370
    %1392 = vmatprep.subr.bf16.mxu0 0
    %1393 = vmatpush1.bf16.msra.mxu0 %v1371
    %1394 = vmatprep.subr.bf16.mxu0 0
    %1395 = vmatpush1.bf16.msra.mxu0 %v1372
    %1396 = vmatprep.subr.bf16.mxu0 0
    %1397 = vmatpush1.bf16.msra.mxu0 %v1373
    %1398 = vmatprep.subr.bf16.mxu0 0
    %1399 = vmatpush1.bf16.msra.mxu0 0
    %1400 = vmatprep.subr.bf16.mxu0 0
    %1401 = vmatpush1.bf16.msra.mxu0 0
    %1402 = vmatprep.subr.bf16.mxu0 0
    %1403 = vmatpush1.bf16.msra.mxu0 0
    %1404 = vmatprep.subr.bf16.mxu0 0
    %1405 = vmatpush1.bf16.msra.mxu0 0
    %1406 = vmatprep.subr.bf16.mxu0 0
    %1407 = vmatpush1.bf16.msra.mxu0 0
    %1408 = vmatprep.subr.bf16.mxu0 0
    %1409 = vmatpush1.bf16.msra.mxu0 0
    %1410 = vmatprep.subr.bf16.mxu0 0
    %1411 = vmatpush1.bf16.msra.mxu0 0
    %1412 = vmatprep.subr.bf16.mxu0 0
    %1413 = vmatpush1.bf16.msra.mxu0 0
    %1414 = vmatprep.mubr.bf16.mxu0 0
    %1415 = vmatmul.mubr.bf16.gmra.mrb[0].mxu0 %v1310
    %v1416 = vpop.f32.mrb[0].mxu0
    %v1417 = vadd.f32 %v1332, %v1416
    %v1418 = vpop.f32.mrb[0].mxu0
    %v1419 = vpop.f32.mrb[0].mxu0
    %v1420 = vadd.f32 %v1332, %v1419
    %v1421 = vpop.f32.mrb[0].mxu0
    %1422 = vdwg.mxu0
    %1423 = vst [vmem:[#allocation10] sm:$0xff] %v1417
    %1424 = vst [vmem:[#allocation10 + $0x8] sm:$0xff] %v1420
    // Predicated region
    $region54: #{tpu_custom_call.1} parent=1 // pred_check
      _
    $region55: #{tpu_custom_call.1} parent=1 // pred_check_branch
      %1426 = sbr.rel (0) target = $region57
    $region56: #{tpu_custom_call.1} parent=1 // pred_region
      %s1428 = ssub.s32 256, 256
      %1429 = vsyncadd [#allocation4], %s1428
      %s1430 = sshll.u32 [#allocation10], 4
      %s1431 = int_to_ptr.vmem [resolvable:$true] %s1430
      %1436 = dma.vmem_to_hbm [thread:$0]  %s1431, 256, %s9, [#allocation4], 128, 128, 8
    $region57: #{tpu_custom_call.1} parent=1 // pred_fallthru
      _
    // Predicated region
    $region58: #{tpu_custom_call.1} parent=1 // pred_check
      _
    $region59: #{tpu_custom_call.1} parent=1 // pred_check_branch
      %1438 = sbr.rel (0) target = $region61
    $region60: #{tpu_custom_call.1} parent=1 // pred_region
      %1439 = dma.done [#allocation4], 256
    $region61: #{tpu_custom_call.1} parent=1 // pred_fallthru
      _
    %1440 = vsyncpa [#allocation3], 1
    %1441 = vsyncpa [#allocation6], 1
    %1442 = vsyncpa [#allocation9], 1
    %1443 = vsyncpa [#allocation4], 1

</llo_original>
